<compile_context>
chip_gen: v5e
topology: v5e:2x2
jax: 0.10.0
libtpu: 0.0.40
codegen_flags: <defaults>
</compile_context>

<pallas_src>
import functools

import jax
import jax.numpy as jnp
from jax.experimental import pallas as pl
from jax.experimental.pallas import tpu as pltpu


def _round_up(x, m):
    return (x + m - 1) // m * m


def _sigmoid(x):
    # sigmoid(x) == 0.5*tanh(0.5*x) + 0.5 : one EUP push instead of exp+divide.
    return 0.5 * jnp.tanh(0.5 * x) + 0.5


# ----------------------------------------------------------------------------- kernel
def _gru_cell_kernel(x_ref, h_ref, wx_ref, whrz_ref, wnh_ref, b_ref,
                     y_ref, hnew_ref, *, hidden, hs):
    """One (batch b, L-tile) block.

    x_ref    : (Cin, Lt)   f32   (cast to compute dtype in-kernel)
    h_ref    : (H,   Lt)   f32   (single stream; f32 kept for the blend)
    wx_ref   : (3*Hs, Cin) compute dtype   rows = [r | z | n_x]
    whrz_ref : (2*Hs, H)   compute dtype   rows = [r | z]  (h-path)
    wnh_ref  : (Hs,   H)   compute dtype   n's h-path (goes through r*h)
    b_ref    : (3*Hs, 1)   f32             stacked biases
    y_ref, hnew_ref : (H, Lt) f32
    """
    cdt = wx_ref.dtype
    h32 = h_ref[...]                               # (H, Lt) f32
    x_c = x_ref[...].astype(cdt)
    h_c = h32.astype(cdt)

    # Gate pre-activations: x-path (all three gates) + bias, h-path (r, z only).
    cc_x = jnp.dot(wx_ref[...], x_c,
                   preferred_element_type=jnp.float32) + b_ref[...]   # (3Hs, Lt)
    cc_h = jnp.dot(whrz_ref[...], h_c,
                   preferred_element_type=jnp.float32)                # (2Hs, Lt)

    r = _sigmoid(cc_x[:hs] + cc_h[:hs])            # (Hs, Lt)
    z = _sigmoid(cc_x[hs:2 * hs] + cc_h[hs:])      # (Hs, Lt)

    rh = (r[:hidden] * h32).astype(cdt)            # (H, Lt)
    cc_n = cc_x[2 * hs:] + jnp.dot(wnh_ref[...], rh,
                                   preferred_element_type=jnp.float32)
    n = _sigmoid(cc_n)[:hidden]                    # module uses sigmoid, not tanh

    y_ref[...] = n
    hnew_ref[...] = n + z[:hidden] * (h32 - n)     # == (1-z)*n + z*h


# ----------------------------------------------------------------------------- tiling
def _pick_tile_l(L, B):
    """Choose the L tile: as large as possible (amortizes per-step overhead),
    divides L, and keeps the last block dim either a multiple of 128 or == L."""
    cap = 2048
    if L <= cap:
        # give the v7x megacore >=2 parallel steps when B == 1 and L splits cleanly
        if B == 1 and L % 256 == 0:
            return L // 2
        return L
    t = cap - (cap % 128)
    while t >= 128:
        if L % t == 0:
            return t
        t -= 128
    return L        # fallback: one block along L (still legal; may be big)


def _vmem_limit_bytes(Cin, H, Hs, tile_l, cdt_itemsize):
    weights = (3 * Hs * Cin + 2 * Hs * H + Hs * H) * cdt_itemsize + 3 * Hs * 4
    stream = (Cin + H) * tile_l * 4 + 2 * H * tile_l * 4   # f32 in/out blocks
    need = weights + 2 * stream                            # double-buffered
    # explicit limit (v5e default scoped is only 16 MiB), capped below v7x's
    # 64 MiB physical VMEM.
    return int(min(max(2 * need + (4 << 20), 32 << 20), 48 << 20))


# ----------------------------------------------------------------------------- wrapper
def conv1d_gru_cell_v2(x, cur_state, params, *, tile_l=None):
    """Forward of Conv1d_GRUcell_v2 (kernel_size == 1).

    x : (B, Cin, L) f32      cur_state = (c, h) with h : (B, H, L) f32
    Returns (y, (c, h_new)) exactly like the PyTorch module.
    """
    c, h = cur_state
    H = params["hidden_dim"]
    Cin = params["input_dim"]
    Hs = params["hs"]
    w_x, w_hrz, w_nh, bias = (params["w_x"], params["w_hrz"],
                              params["w_nh"], params["bias"])

    B, cin_x, L = x.shape
    assert cin_x == Cin and h.shape == (B, H, L)

    if tile_l is None:
        tile_l = _pick_tile_l(L, B)
    assert L % tile_l == 0
    grid = (B, L // tile_l)

    kernel = functools.partial(_gru_cell_kernel, hidden=H, hs=Hs)

    y, h_new = pl.pallas_call(
        kernel,
        out_shape=(jax.ShapeDtypeStruct((B, H, L), jnp.float32),
                   jax.ShapeDtypeStruct((B, H, L), jnp.float32)),
        grid=grid,
        in_specs=[
            pl.BlockSpec((None, Cin, tile_l), lambda b, l: (b, 0, l)),   # x
            pl.BlockSpec((None, H, tile_l), lambda b, l: (b, 0, l)),     # h (f32, once)
            pl.BlockSpec((3 * Hs, Cin), lambda b, l: (0, 0)),            # W_x resident
            pl.BlockSpec((2 * Hs, H), lambda b, l: (0, 0)),              # W_hrz resident
            pl.BlockSpec((Hs, H), lambda b, l: (0, 0)),                  # W_nh resident
            pl.BlockSpec((3 * Hs, 1), lambda b, l: (0, 0)),              # bias resident
        ],
        out_specs=(
            pl.BlockSpec((None, H, tile_l), lambda b, l: (b, 0, l)),
            pl.BlockSpec((None, H, tile_l), lambda b, l: (b, 0, l)),
        ),
        compiler_params=pltpu.CompilerParams(
            dimension_semantics=("parallel", "parallel"),
            vmem_limit_bytes=_vmem_limit_bytes(Cin, H, Hs, tile_l,
                                               jnp.dtype(w_x.dtype).itemsize)),
    )(x, h, w_x, w_hrz, w_nh, bias)

    # c is passed through untouched (None from init_hidden), like the module.
    return y, (c, h_new)


# ----------------------------------------------------------------------------- params
def pack_params(w1, b1, w2, b2, input_dim, hidden_dim,
                compute_dtype=jnp.bfloat16):
    """Re-layout the two Conv1d (kernel_size=1) weights for the fused kernel.

    w1 : (2H, Cin+H, 1) conv1 weight   b1 : (2H,)
    w2 : (H,  Cin+H, 1) conv2 weight   b2 : (H,)
    Weights are stored ONCE in `compute_dtype` (bf16 default); biases stay f32.
    Gate blocks are padded to Hs = round_up(H, 8) rows so in-kernel gate slices
    stay sublane-aligned (Hs == H for any H that is a multiple of 8).
    """
    H, Cin = hidden_dim, input_dim
    assert w1.shape[2] == 1 and w2.shape[2] == 1, "only kernel_size=1 supported"
    Hs = _round_up(H, 8)

    w1 = w1[:, :, 0]                       # (2H, Cin+H)  (out, in) conv layout
    w2 = w2[:, :, 0]                       # (H,  Cin+H)
    w1x, w1h = w1[:, :Cin], w1[:, Cin:]    # (2H, Cin), (2H, H)
    w2x, w2h = w2[:, :Cin], w2[:, Cin:]    # (H, Cin),  (H, H)

    w_x = jnp.zeros((3 * Hs, Cin), jnp.float32)
    w_x = w_x.at[0:H].set(w1x[:H])                  # r (x-part)
    w_x = w_x.at[Hs:Hs + H].set(w1x[H:])            # z (x-part)
    w_x = w_x.at[2 * Hs:2 * Hs + H].set(w2x)        # n (x-part)

    w_hrz = jnp.zeros((2 * Hs, H), jnp.float32)
    w_hrz = w_hrz.at[0:H].set(w1h[:H])              # r (h-part)
    w_hrz = w_hrz.at[Hs:Hs + H].set(w1h[H:])        # z (h-part)

    w_nh = jnp.zeros((Hs, H), jnp.float32).at[:H].set(w2h)   # n's h-path (via r*h)

    bias = jnp.zeros((3 * Hs, 1), jnp.float32)
    bias = bias.at[0:H, 0].set(b1[:H])
    bias = bias.at[Hs:Hs + H, 0].set(b1[H:])
    bias = bias.at[2 * Hs:2 * Hs + H, 0].set(b2)

    return dict(w_x=w_x.astype(compute_dtype),
                w_hrz=w_hrz.astype(compute_dtype),
                w_nh=w_nh.astype(compute_dtype),
                bias=bias,
                hidden_dim=H, input_dim=Cin, hs=Hs)


# ----------------------------------------------------------------------------- reference
def reference_forward(x, h, w1, b1, w2, b2, hidden_dim):
    """Pure-JAX replica of the PyTorch forward (kernel_size=1 pointwise conv)."""
    def conv1x1(inp, w, b):
        return jnp.einsum('bcl,oc->bol', inp, w[:, :, 0]) + b[None, :, None]

    combined1 = jnp.concatenate([x, h], axis=1)
    cc = conv1x1(combined1, w1, b1)
    cc_r, cc_z = cc[:, :hidden_dim], cc[:, hidden_dim:]
    r = jax.nn.sigmoid(cc_r)
    z = jax.nn.sigmoid(cc_z)
    combined2 = jnp.concatenate([x, r * h], axis=1)
    n = jax.nn.sigmoid(conv1x1(combined2, w2, b2))
    h_new = (1.0 - z) * n + z * h
    return n, h_new


# ----------------------------------------------------------------------------- main
if __name__ == "__main__":
    input_dim, hidden_dim = 4, 32
    batch, length = 2, 16                   # (B, Cin, L) as the Conv1d module expects

    key = jax.random.PRNGKey(0)
    k1, k2, k3, k4, kx, kh = jax.random.split(key, 6)

    # torch.nn.Conv1d default init: U(-1/sqrt(fan_in*k), +1/sqrt(fan_in*k))
    fan_in = input_dim + hidden_dim
    bound = 1.0 / jnp.sqrt(jnp.float32(fan_in))
    w1 = jax.random.uniform(k1, (2 * hidden_dim, fan_in, 1), jnp.float32, -bound, bound)
    b1 = jax.random.uniform(k2, (2 * hidden_dim,), jnp.float32, -bound, bound)
    w2 = jax.random.uniform(k3, (hidden_dim, fan_in, 1), jnp.float32, -bound, bound)
    b2 = jax.random.uniform(k4, (hidden_dim,), jnp.float32, -bound, bound)

    x = jax.random.normal(kx, (batch, input_dim, length), jnp.float32)
    h = jax.random.normal(kh, (batch, hidden_dim, length), jnp.float32)
    c = None                                 # init_hidden returns (None, zeros)

    y_ref, h_ref = reference_forward(x, h, w1, b1, w2, b2, hidden_dim)

    # f32-weight path — tight correctness check of the kernel math.
    params_f32 = pack_params(w1, b1, w2, b2, input_dim, hidden_dim,
                             compute_dtype=jnp.float32)
    y32, (c_out, h32) = conv1d_gru_cell_v2(x, (c, h), params_f32)
    jax.block_until_ready((y32, h32))
    assert c_out is None
    assert jnp.allclose(y32, y_ref, atol=1e-5, rtol=1e-5)
    assert jnp.allclose(h32, h_ref, atol=1e-5, rtol=1e-5)

    # default path: bf16 matmul operands (packed once), f32 accumulation/epilogue.
    params_bf16 = pack_params(w1, b1, w2, b2, input_dim, hidden_dim)
    y16, (_, h16) = conv1d_gru_cell_v2(x, (c, h), params_bf16)
    jax.block_until_ready((y16, h16))
    assert jnp.allclose(y16, y_ref, atol=2e-2, rtol=2e-2)
    assert jnp.allclose(h16, h_ref, atol=2e-2, rtol=2e-2)

    print("KERNEL_OK")
</pallas_src>

<mosaic_0001>
module attributes {stable_mosaic.version = 11 : i64} {
  func.func @_gru_cell_kernel(%arg0: i32, %arg1: i32, %arg2: memref<1x4x16xf32, #tpu.memory_space<vmem>>, %arg3: memref<1x32x16xf32, #tpu.memory_space<vmem>>, %arg4: memref<96x4xf32, #tpu.memory_space<vmem>>, %arg5: memref<64x32xf32, #tpu.memory_space<vmem>>, %arg6: memref<32x32xf32, #tpu.memory_space<vmem>>, %arg7: memref<96x1xf32, #tpu.memory_space<vmem>>, %arg8: memref<1x32x16xf32, #tpu.memory_space<vmem>>, %arg9: memref<1x32x16xf32, #tpu.memory_space<vmem>>) attributes {dimension_semantics = [#tpu.dimension_semantics<parallel>, #tpu.dimension_semantics<parallel>], iteration_bounds = array<i64: 2, 1>, scalar_prefetch = 0 : i64, scratch_operands = 0 : i64, tpu.core_type = #tpu.core_type<tc>, window_params = [{transform_indices = @transform_0, window_bounds = array<i64: 1, 4, 16>}, {transform_indices = @transform_1, window_bounds = array<i64: 1, 32, 16>}, {pipeline_mode = #tpu.pipeline_mode<synchronous>, transform_indices = @transform_2, window_bounds = array<i64: 96, 4>}, {pipeline_mode = #tpu.pipeline_mode<synchronous>, transform_indices = @transform_3, window_bounds = array<i64: 64, 32>}, {pipeline_mode = #tpu.pipeline_mode<synchronous>, transform_indices = @transform_4, window_bounds = array<i64: 32, 32>}, {pipeline_mode = #tpu.pipeline_mode<synchronous>, transform_indices = @transform_5, window_bounds = array<i64: 96, 1>}, {transform_indices = @transform_6, window_bounds = array<i64: 1, 32, 16>}, {transform_indices = @transform_7, window_bounds = array<i64: 1, 32, 16>}]} {
    %c0 = arith.constant 0 : index
    %c0_0 = arith.constant 0 : index
    %c0_1 = arith.constant 0 : index
    %0 = vector.load %arg3[%c0, %c0_0, %c0_1] : memref<1x32x16xf32, #tpu.memory_space<vmem>>, vector<1x32x16xf32>
    %1 = vector.shape_cast %0 : vector<1x32x16xf32> to vector<32x16xf32>
    %c0_2 = arith.constant 0 : index
    %c0_3 = arith.constant 0 : index
    %c0_4 = arith.constant 0 : index
    %2 = vector.load %arg2[%c0_2, %c0_3, %c0_4] : memref<1x4x16xf32, #tpu.memory_space<vmem>>, vector<1x4x16xf32>
    %3 = vector.shape_cast %2 : vector<1x4x16xf32> to vector<4x16xf32>
    %c0_5 = arith.constant 0 : index
    %c0_6 = arith.constant 0 : index
    %4 = vector.load %arg4[%c0_5, %c0_6] : memref<96x4xf32, #tpu.memory_space<vmem>>, vector<96x4xf32>
    %cst = arith.constant dense<0.000000e+00> : vector<96x16xf32>
    %5 = tpu.matmul %4, %3, %cst {dimension_numbers = #tpu.dot_dimension_numbers<[1], [0], [0], [1], [0, 0, 1, 1], [], []>} : vector<96x4xf32>, vector<4x16xf32>, vector<96x16xf32> -> vector<96x16xf32>
    %c0_7 = arith.constant 0 : index
    %c0_8 = arith.constant 0 : index
    %6 = vector.load %arg7[%c0_7, %c0_8] : memref<96x1xf32, #tpu.memory_space<vmem>>, vector<96x1xf32>
    %7 = vector.broadcast %6 : vector<96x1xf32> to vector<96x16xf32>
    %8 = arith.addf %5, %7 : vector<96x16xf32>
    %c0_9 = arith.constant 0 : index
    %c0_10 = arith.constant 0 : index
    %9 = vector.load %arg5[%c0_9, %c0_10] : memref<64x32xf32, #tpu.memory_space<vmem>>, vector<64x32xf32>
    %cst_11 = arith.constant dense<0.000000e+00> : vector<64x16xf32>
    %10 = tpu.matmul %9, %1, %cst_11 {dimension_numbers = #tpu.dot_dimension_numbers<[1], [0], [0], [1], [0, 0, 1, 1], [], []>} : vector<64x32xf32>, vector<32x16xf32>, vector<64x16xf32> -> vector<64x16xf32>
    %11 = vector.extract_strided_slice %8 {offsets = [0, 0], sizes = [32, 16], strides = [1, 1]} : vector<96x16xf32> to vector<32x16xf32>
    %12 = vector.extract_strided_slice %10 {offsets = [0, 0], sizes = [32, 16], strides = [1, 1]} : vector<64x16xf32> to vector<32x16xf32>
    %13 = arith.addf %11, %12 : vector<32x16xf32>
    %cst_12 = arith.constant 5.000000e-01 : f32
    %14 = vector.broadcast %cst_12 : f32 to vector<32x16xf32>
    %15 = arith.mulf %14, %13 : vector<32x16xf32>
    %16 = math.tanh %15 : vector<32x16xf32>
    %cst_13 = arith.constant 5.000000e-01 : f32
    %17 = vector.broadcast %cst_13 : f32 to vector<32x16xf32>
    %18 = arith.mulf %17, %16 : vector<32x16xf32>
    %cst_14 = arith.constant 5.000000e-01 : f32
    %19 = vector.broadcast %cst_14 : f32 to vector<32x16xf32>
    %20 = arith.addf %18, %19 : vector<32x16xf32>
    %21 = vector.extract_strided_slice %8 {offsets = [32, 0], sizes = [32, 16], strides = [1, 1]} : vector<96x16xf32> to vector<32x16xf32>
    %22 = vector.extract_strided_slice %10 {offsets = [32, 0], sizes = [32, 16], strides = [1, 1]} : vector<64x16xf32> to vector<32x16xf32>
    %23 = arith.addf %21, %22 : vector<32x16xf32>
    %cst_15 = arith.constant 5.000000e-01 : f32
    %24 = vector.broadcast %cst_15 : f32 to vector<32x16xf32>
    %25 = arith.mulf %24, %23 : vector<32x16xf32>
    %26 = math.tanh %25 : vector<32x16xf32>
    %cst_16 = arith.constant 5.000000e-01 : f32
    %27 = vector.broadcast %cst_16 : f32 to vector<32x16xf32>
    %28 = arith.mulf %27, %26 : vector<32x16xf32>
    %cst_17 = arith.constant 5.000000e-01 : f32
    %29 = vector.broadcast %cst_17 : f32 to vector<32x16xf32>
    %30 = arith.addf %28, %29 : vector<32x16xf32>
    %31 = arith.mulf %20, %1 : vector<32x16xf32>
    %32 = vector.extract_strided_slice %8 {offsets = [64, 0], sizes = [32, 16], strides = [1, 1]} : vector<96x16xf32> to vector<32x16xf32>
    %c0_18 = arith.constant 0 : index
    %c0_19 = arith.constant 0 : index
    %33 = vector.load %arg6[%c0_18, %c0_19] : memref<32x32xf32, #tpu.memory_space<vmem>>, vector<32x32xf32>
    %cst_20 = arith.constant dense<0.000000e+00> : vector<32x16xf32>
    %34 = tpu.matmul %33, %31, %cst_20 {dimension_numbers = #tpu.dot_dimension_numbers<[1], [0], [0], [1], [0, 0, 1, 1], [], []>} : vector<32x32xf32>, vector<32x16xf32>, vector<32x16xf32> -> vector<32x16xf32>
    %35 = arith.addf %32, %34 : vector<32x16xf32>
    %cst_21 = arith.constant 5.000000e-01 : f32
    %36 = vector.broadcast %cst_21 : f32 to vector<32x16xf32>
    %37 = arith.mulf %36, %35 : vector<32x16xf32>
    %38 = math.tanh %37 : vector<32x16xf32>
    %cst_22 = arith.constant 5.000000e-01 : f32
    %39 = vector.broadcast %cst_22 : f32 to vector<32x16xf32>
    %40 = arith.mulf %39, %38 : vector<32x16xf32>
    %cst_23 = arith.constant 5.000000e-01 : f32
    %41 = vector.broadcast %cst_23 : f32 to vector<32x16xf32>
    %42 = arith.addf %40, %41 : vector<32x16xf32>
    %c0_24 = arith.constant 0 : index
    %c0_25 = arith.constant 0 : index
    %c0_26 = arith.constant 0 : index
    %43 = vector.load %arg8[%c0_24, %c0_25, %c0_26] : memref<1x32x16xf32, #tpu.memory_space<vmem>>, vector<1x32x16xf32>
    %44 = vector.shape_cast %43 : vector<1x32x16xf32> to vector<32x16xf32>
    %45 = vector.shape_cast %42 : vector<32x16xf32> to vector<1x32x16xf32>
    tpu.vector_store %arg8[%c0_24, %c0_25, %c0_26], %45 {strides = array<i32>} : memref<1x32x16xf32, #tpu.memory_space<vmem>>, vector<1x32x16xf32>,
    %46 = arith.subf %1, %42 : vector<32x16xf32>
    %47 = arith.mulf %30, %46 : vector<32x16xf32>
    %48 = arith.addf %42, %47 : vector<32x16xf32>
    %c0_27 = arith.constant 0 : index
    %c0_28 = arith.constant 0 : index
    %c0_29 = arith.constant 0 : index
    %49 = vector.load %arg9[%c0_27, %c0_28, %c0_29] : memref<1x32x16xf32, #tpu.memory_space<vmem>>, vector<1x32x16xf32>
    %50 = vector.shape_cast %49 : vector<1x32x16xf32> to vector<32x16xf32>
    %51 = vector.shape_cast %48 : vector<32x16xf32> to vector<1x32x16xf32>
    tpu.vector_store %arg9[%c0_27, %c0_28, %c0_29], %51 {strides = array<i32>} : memref<1x32x16xf32, #tpu.memory_space<vmem>>, vector<1x32x16xf32>,
    return
  }
  func.func @transform_0(%arg0: i32, %arg1: i32) -> (i32, i32, i32) {
    %c0_i32 = arith.constant 0 : i32
    %c0_i32_0 = arith.constant 0 : i32
    return %arg0, %c0_i32, %arg1 : i32, i32, i32
  }
  func.func @transform_1(%arg0: i32, %arg1: i32) -> (i32, i32, i32) {
    %c0_i32 = arith.constant 0 : i32
    %c0_i32_0 = arith.constant 0 : i32
    return %arg0, %c0_i32, %arg1 : i32, i32, i32
  }
  func.func @transform_2(%arg0: i32, %arg1: i32) -> (i32, i32) {
    %c0_i32 = arith.constant 0 : i32
    %c0_i32_0 = arith.constant 0 : i32
    %c0_i32_1 = arith.constant 0 : i32
    return %c0_i32, %c0_i32_0 : i32, i32
  }
  func.func @transform_3(%arg0: i32, %arg1: i32) -> (i32, i32) {
    %c0_i32 = arith.constant 0 : i32
    %c0_i32_0 = arith.constant 0 : i32
    %c0_i32_1 = arith.constant 0 : i32
    return %c0_i32, %c0_i32_0 : i32, i32
  }
  func.func @transform_4(%arg0: i32, %arg1: i32) -> (i32, i32) {
    %c0_i32 = arith.constant 0 : i32
    %c0_i32_0 = arith.constant 0 : i32
    %c0_i32_1 = arith.constant 0 : i32
    return %c0_i32, %c0_i32_0 : i32, i32
  }
  func.func @transform_5(%arg0: i32, %arg1: i32) -> (i32, i32) {
    %c0_i32 = arith.constant 0 : i32
    %c0_i32_0 = arith.constant 0 : i32
    %c0_i32_1 = arith.constant 0 : i32
    return %c0_i32, %c0_i32_0 : i32, i32
  }
  func.func @transform_6(%arg0: i32, %arg1: i32) -> (i32, i32, i32) {
    %c0_i32 = arith.constant 0 : i32
    %c0_i32_0 = arith.constant 0 : i32
    return %arg0, %c0_i32, %arg1 : i32, i32, i32
  }
  func.func @transform_7(%arg0: i32, %arg1: i32) -> (i32, i32, i32) {
    %c0_i32 = arith.constant 0 : i32
    %c0_i32_0 = arith.constant 0 : i32
    return %arg0, %c0_i32, %arg1 : i32, i32, i32
  }
}

</mosaic_0001>

<llo_original>
// kernel: tpu_custom_call.1
$region0: #{tpu_custom_call.1}
  #allocation0 [shape = 'u32[]', space=smem, size = 0x4, offset = 0x4, fixed_abs, tag = 'smem constant byte address 0x4 - core index']
  #allocation1 [shape = 'u32[72,128]{1,0:T(1,128)}', space=vmem, size = 0x9000, scoped, tag = 'internal scratch']
  %s0 = inlined_call_operand.vmem [shape: f32[2,4,16], index: 0, kind: input, shape index: {}]
  %s1 = inlined_call_operand.vmem [shape: f32[2,32,16], index: 1, kind: input, shape index: {}]
  %s2 = inlined_call_operand.vmem [shape: f32[96,4], index: 2, kind: input, shape index: {}]
  %s3 = inlined_call_operand.vmem [shape: f32[64,32], index: 3, kind: input, shape index: {}]
  %s4 = inlined_call_operand.vmem [shape: f32[32,32], index: 4, kind: input, shape index: {}]
  %s5 = inlined_call_operand.vmem [shape: f32[96,1], index: 5, kind: input, shape index: {}]
  %s6 = inlined_call_operand.vmem [shape: f32[2,32,16], index: 6, kind: output, shape index: {0}]
  %s7 = inlined_call_operand.vmem [shape: f32[2,32,16], index: 7, kind: output, shape index: {1}]
  %8 = xla_tuple %s6, %s7
  %s9 = sld [smem:[#allocation0]]
  $region65: #{tpu_custom_call.1} parent=0
    _
  %s11 = ssub.s32 1, %s9
  %s12 = scalar_select 0, %s11, %s9
  loop: start=0, step=1, limit=4
  $region2: #{tpu_custom_call.1} parent=0 // loop_pre_header
    _
  $region3: #{tpu_custom_call.1} parent=0 // loop_header
    %s14 = sphi 0, %s18
    %p15 = scmp.ge.s32.totalorder %s14, 4
    %s21 = sphi 0, %s33
    %s22 = sphi 0, %s29
    %s23 = sphi 0, %s21
    %s24 = sphi 0, %s22
    %s25 = sphi 0, %s23
    %s26 = sphi 0, %s24
    %s38 = sphi 0, %s40
    %s41 = sphi 0, %s38
    %s42 = sphi 0, %s41
    %s58 = sphi 0, %s42
    %s66 = sphi 0, %s68
    %s69 = sphi 0, %s66
    %s70 = sphi 0, %s69
    %s86 = sphi 0, %s70
    %s90 = sphi 0, %s90
    %s92 = sphi 0, %s90
    %s93 = sphi 0, %s92
    %s107 = sphi 0, %s93
    %s111 = sphi 0, %s111
    %s113 = sphi 0, %s111
    %s114 = sphi 0, %s113
    %s128 = sphi 0, %s114
    %s132 = sphi 0, %s132
    %s134 = sphi 0, %s132
    %s135 = sphi 0, %s134
    %s149 = sphi 0, %s135
    %s153 = sphi 0, %s153
    %s155 = sphi 0, %s153
    %s156 = sphi 0, %s155
    %s170 = sphi 0, %s156
    %s178 = sphi 0, %s180
    %s181 = sphi 0, %s178
    %s182 = sphi 0, %s181
    %s198 = sphi 0, %s182
    %s206 = sphi 0, %s208
    %s209 = sphi 0, %s206
    %s210 = sphi 0, %s209
    %s226 = sphi 0, %s210
  $region4: #{tpu_custom_call.1} parent=0 // loop_header_branch
    %17 = sbr.rel (%p15) target = $region8
  $region5: #{tpu_custom_call.1} parent=0 // loop_body
    %s19 = ssub.s32 %s14, 1
    %s20 = ssub.s32 %s14, 2
    %s27 = sadd.s32 1, %s22
    %p28 = scmp.ge.s32.totalorder %s27, 1
    %s29 = scalar_select %p28, 0, %s27
    %s30 = sadd.s32 1, %s21
    %s31 = scalar_select %p28, %s30, %s21
    %p32 = scmp.ge.s32.totalorder %s31, 2
    %s33 = scalar_select %p32, 0, %s31
    %s34 = ssub.s32 %s21, %s33
    %s35 = ssub.s32 %s22, %s29
    %s36 = sor.u32 %s34, %s35
    %p37 = scmp.eq.s32.totalorder %s36, 0
    %s39 = sadd.s32 %s38, 1
    %s40 = scalar_select %p37, %s38, %s39
    %p43 = pneg %p37
    %p44 = scmp.eq.s32.totalorder %s14, 1
    %p45 = por %p43, %p44
    %p46 = scmp.ne.s32.totalorder %s38, %s41
    %p47 = scmp.eq.s32.totalorder %s14, 0
    %p48 = por %p46, %p47
    %p49 = scmp.ne.s32.totalorder %s38, %s41
    %p50 = scmp.eq.s32.totalorder %s19, 1
    %p51 = por %p49, %p50
    %p52 = scmp.ne.s32.totalorder %s41, %s42
    %p53 = scmp.eq.s32.totalorder %s19, 0
    %p54 = por %p52, %p53
    %p55 = scmp.ne.s32.totalorder %s41, %s42
    %p56 = scmp.eq.s32.totalorder %s20, 1
    %p57 = por %p55, %p56
    %p59 = scmp.ne.s32.totalorder %s42, %s58
    %p60 = scmp.eq.s32.totalorder %s20, 0
    %p61 = por %p59, %p60
    %s62 = ssub.s32 %s21, %s33
    %s63 = ssub.s32 %s22, %s29
    %s64 = sor.u32 %s62, %s63
    %p65 = scmp.eq.s32.totalorder %s64, 0
    %s67 = sadd.s32 %s66, 1
    %s68 = scalar_select %p65, %s66, %s67
    %p71 = pneg %p65
    %p72 = scmp.eq.s32.totalorder %s14, 1
    %p73 = por %p71, %p72
    %p74 = scmp.ne.s32.totalorder %s66, %s69
    %p75 = scmp.eq.s32.totalorder %s14, 0
    %p76 = por %p74, %p75
    %p77 = scmp.ne.s32.totalorder %s66, %s69
    %p78 = scmp.eq.s32.totalorder %s19, 1
    %p79 = por %p77, %p78
    %p80 = scmp.ne.s32.totalorder %s69, %s70
    %p81 = scmp.eq.s32.totalorder %s19, 0
    %p82 = por %p80, %p81
    %p83 = scmp.ne.s32.totalorder %s69, %s70
    %p84 = scmp.eq.s32.totalorder %s20, 1
    %p85 = por %p83, %p84
    %p87 = scmp.ne.s32.totalorder %s70, %s86
    %p88 = scmp.eq.s32.totalorder %s20, 0
    %p89 = por %p87, %p88
    %s91 = sadd.s32 %s90, 1
    %p94 = scmp.eq.s32.totalorder %s14, 1
    %p95 = scmp.ne.s32.totalorder %s90, %s92
    %p96 = scmp.eq.s32.totalorder %s14, 0
    %p97 = por %p95, %p96
    %p98 = scmp.ne.s32.totalorder %s90, %s92
    %p99 = scmp.eq.s32.totalorder %s19, 1
    %p100 = por %p98, %p99
    %p101 = scmp.ne.s32.totalorder %s92, %s93
    %p102 = scmp.eq.s32.totalorder %s19, 0
    %p103 = por %p101, %p102
    %p104 = scmp.ne.s32.totalorder %s92, %s93
    %p105 = scmp.eq.s32.totalorder %s20, 1
    %p106 = por %p104, %p105
    %p108 = scmp.ne.s32.totalorder %s93, %s107
    %p109 = scmp.eq.s32.totalorder %s20, 0
    %p110 = por %p108, %p109
    %s112 = sadd.s32 %s111, 1
    %p115 = scmp.eq.s32.totalorder %s14, 1
    %p116 = scmp.ne.s32.totalorder %s111, %s113
    %p117 = scmp.eq.s32.totalorder %s14, 0
    %p118 = por %p116, %p117
    %p119 = scmp.ne.s32.totalorder %s111, %s113
    %p120 = scmp.eq.s32.totalorder %s19, 1
    %p121 = por %p119, %p120
    %p122 = scmp.ne.s32.totalorder %s113, %s114
    %p123 = scmp.eq.s32.totalorder %s19, 0
    %p124 = por %p122, %p123
    %p125 = scmp.ne.s32.totalorder %s113, %s114
    %p126 = scmp.eq.s32.totalorder %s20, 1
    %p127 = por %p125, %p126
    %p129 = scmp.ne.s32.totalorder %s114, %s128
    %p130 = scmp.eq.s32.totalorder %s20, 0
    %p131 = por %p129, %p130
    %s133 = sadd.s32 %s132, 1
    %p136 = scmp.eq.s32.totalorder %s14, 1
    %p137 = scmp.ne.s32.totalorder %s132, %s134
    %p138 = scmp.eq.s32.totalorder %s14, 0
    %p139 = por %p137, %p138
    %p140 = scmp.ne.s32.totalorder %s132, %s134
    %p141 = scmp.eq.s32.totalorder %s19, 1
    %p142 = por %p140, %p141
    %p143 = scmp.ne.s32.totalorder %s134, %s135
    %p144 = scmp.eq.s32.totalorder %s19, 0
    %p145 = por %p143, %p144
    %p146 = scmp.ne.s32.totalorder %s134, %s135
    %p147 = scmp.eq.s32.totalorder %s20, 1
    %p148 = por %p146, %p147
    %p150 = scmp.ne.s32.totalorder %s135, %s149
    %p151 = scmp.eq.s32.totalorder %s20, 0
    %p152 = por %p150, %p151
    %s154 = sadd.s32 %s153, 1
    %p157 = scmp.eq.s32.totalorder %s14, 1
    %p158 = scmp.ne.s32.totalorder %s153, %s155
    %p159 = scmp.eq.s32.totalorder %s14, 0
    %p160 = por %p158, %p159
    %p161 = scmp.ne.s32.totalorder %s153, %s155
    %p162 = scmp.eq.s32.totalorder %s19, 1
    %p163 = por %p161, %p162
    %p164 = scmp.ne.s32.totalorder %s155, %s156
    %p165 = scmp.eq.s32.totalorder %s19, 0
    %p166 = por %p164, %p165
    %p167 = scmp.ne.s32.totalorder %s155, %s156
    %p168 = scmp.eq.s32.totalorder %s20, 1
    %p169 = por %p167, %p168
    %p171 = scmp.ne.s32.totalorder %s156, %s170
    %p172 = scmp.eq.s32.totalorder %s20, 0
    %p173 = por %p171, %p172
    %s174 = ssub.s32 %s21, %s33
    %s175 = ssub.s32 %s22, %s29
    %s176 = sor.u32 %s174, %s175
    %p177 = scmp.eq.s32.totalorder %s176, 0
    %s179 = sadd.s32 %s178, 1
    %s180 = scalar_select %p177, %s178, %s179
    %p183 = pneg %p177
    %p184 = scmp.eq.s32.totalorder %s14, 1
    %p185 = por %p183, %p184
    %p186 = scmp.ne.s32.totalorder %s178, %s181
    %p187 = scmp.eq.s32.totalorder %s14, 0
    %p188 = por %p186, %p187
    %p189 = scmp.ne.s32.totalorder %s178, %s181
    %p190 = scmp.eq.s32.totalorder %s19, 1
    %p191 = por %p189, %p190
    %p192 = scmp.ne.s32.totalorder %s181, %s182
    %p193 = scmp.eq.s32.totalorder %s19, 0
    %p194 = por %p192, %p193
    %p195 = scmp.ne.s32.totalorder %s181, %s182
    %p196 = scmp.eq.s32.totalorder %s20, 1
    %p197 = por %p195, %p196
    %p199 = scmp.ne.s32.totalorder %s182, %s198
    %p200 = scmp.eq.s32.totalorder %s20, 0
    %p201 = por %p199, %p200
    %s202 = ssub.s32 %s21, %s33
    %s203 = ssub.s32 %s22, %s29
    %s204 = sor.u32 %s202, %s203
    %p205 = scmp.eq.s32.totalorder %s204, 0
    %s207 = sadd.s32 %s206, 1
    %s208 = scalar_select %p205, %s206, %s207
    %p211 = pneg %p205
    %p212 = scmp.eq.s32.totalorder %s14, 1
    %p213 = por %p211, %p212
    %p214 = scmp.ne.s32.totalorder %s206, %s209
    %p215 = scmp.eq.s32.totalorder %s14, 0
    %p216 = por %p214, %p215
    %p217 = scmp.ne.s32.totalorder %s206, %s209
    %p218 = scmp.eq.s32.totalorder %s19, 1
    %p219 = por %p217, %p218
    %p220 = scmp.ne.s32.totalorder %s209, %s210
    %p221 = scmp.eq.s32.totalorder %s19, 0
    %p222 = por %p220, %p221
    %p223 = scmp.ne.s32.totalorder %s209, %s210
    %p224 = scmp.eq.s32.totalorder %s20, 1
    %p225 = por %p223, %p224
    %p227 = scmp.ne.s32.totalorder %s210, %s226
    %p228 = scmp.eq.s32.totalorder %s20, 0
    %p229 = por %p227, %p228
    %p230 = scmp.le.s32.totalorder 1, %s14
    %p231 = scmp.lt.s32.totalorder %s14, 3
    %p232 = pnand %p230, %p231
    %p233 = pneg %p232
    // Predicated region
    $region9: #{tpu_custom_call.1} parent=5 // pred_check
      _
    $region10: #{tpu_custom_call.1} parent=5 // pred_check_branch
      %235 = sbr.rel (%p232) target = $region12
    $region11: #{tpu_custom_call.1} parent=5 // pred_region
      %s236 = ssub.s32 %s14, 1
      // Predicated region
      $region13: #{tpu_custom_call.1} parent=11 // pred_check
        %p237 = pneg %p103
      $region14: #{tpu_custom_call.1} parent=11 // pred_check_branch
        %239 = sbr.rel (%p237) target = $region16
      $region15: #{tpu_custom_call.1} parent=11 // pred_region
        _
      $region16: #{tpu_custom_call.1} parent=11 // pred_fallthru
        _
      // Predicated region
      $region17: #{tpu_custom_call.1} parent=11 // pred_check
        %p240 = pneg %p124
      $region18: #{tpu_custom_call.1} parent=11 // pred_check_branch
        %242 = sbr.rel (%p240) target = $region20
      $region19: #{tpu_custom_call.1} parent=11 // pred_region
        _
      $region20: #{tpu_custom_call.1} parent=11 // pred_fallthru
        _
      // Predicated region
      $region21: #{tpu_custom_call.1} parent=11 // pred_check
        %p243 = pneg %p145
      $region22: #{tpu_custom_call.1} parent=11 // pred_check_branch
        %245 = sbr.rel (%p243) target = $region24
      $region23: #{tpu_custom_call.1} parent=11 // pred_region
        _
      $region24: #{tpu_custom_call.1} parent=11 // pred_fallthru
        _
      // Predicated region
      $region25: #{tpu_custom_call.1} parent=11 // pred_check
        %p246 = pneg %p166
      $region26: #{tpu_custom_call.1} parent=11 // pred_check_branch
        %248 = sbr.rel (%p246) target = $region28
      $region27: #{tpu_custom_call.1} parent=11 // pred_region
        _
      $region28: #{tpu_custom_call.1} parent=11 // pred_fallthru
        _
    $region12: #{tpu_custom_call.1} parent=5 // pred_fallthru
      _
    %p249 = scmp.lt.s32.totalorder %s14, 2
    // Predicated region
    $region29: #{tpu_custom_call.1} parent=5 // pred_check
      %p250 = pneg %p249
    $region30: #{tpu_custom_call.1} parent=5 // pred_check_branch
      %252 = sbr.rel (%p250) target = $region32
    $region31: #{tpu_custom_call.1} parent=5 // pred_region
      // Predicated region
      $region33: #{tpu_custom_call.1} parent=31 // pred_check
        %p253 = pneg %p48
      $region34: #{tpu_custom_call.1} parent=31 // pred_check_branch
        %255 = sbr.rel (%p253) target = $region36
      $region35: #{tpu_custom_call.1} parent=31 // pred_region
        %p256 = scmp.lt.s32.totalorder %s21, 1
        %s257 = scalar_select %p256, %s21, 1
        %p258 = scmp.lt.s32.totalorder %s22, 0
        %s259 = scalar_select %p258, %s22, 0
        %s260 = sadd.s32 %s259, %s257
        %s261 = smul.addr %s260, 4
        %s262 = scalar_lea.vmem %s0, %s261
      $region36: #{tpu_custom_call.1} parent=31 // pred_fallthru
        _
      // Predicated region
      $region37: #{tpu_custom_call.1} parent=31 // pred_check
        %p263 = pneg %p76
      $region38: #{tpu_custom_call.1} parent=31 // pred_check_branch
        %265 = sbr.rel (%p263) target = $region40
      $region39: #{tpu_custom_call.1} parent=31 // pred_region
        %p266 = scmp.lt.s32.totalorder %s21, 1
        %s267 = scalar_select %p266, %s21, 1
        %p268 = scmp.lt.s32.totalorder %s22, 0
        %s269 = scalar_select %p268, %s22, 0
        %s270 = smul.addr %s267, 4
        %s271 = sadd.s32 %s269, %s270
        %s272 = smul.addr %s271, 8
        %s273 = scalar_lea.vmem %s1, %s272
      $region40: #{tpu_custom_call.1} parent=31 // pred_fallthru
        _
    $region32: #{tpu_custom_call.1} parent=5 // pred_fallthru
      _
    %p274 = scmp.le.s32.totalorder 1, %s14
    %p275 = scmp.lt.s32.totalorder %s14, 3
    %p276 = pnand %p274, %p275
    %p277 = pneg %p276
    // Predicated region
    $region41: #{tpu_custom_call.1} parent=5 // pred_check
      _
    $region42: #{tpu_custom_call.1} parent=5 // pred_check_branch
      %279 = sbr.rel (%p276) target = $region44
    $region43: #{tpu_custom_call.1} parent=5 // pred_region
      %s280 = ssub.s32 %s14, 1
      %p281 = scmp.lt.s32.totalorder %s23, 1
      %s282 = scalar_select %p281, %s23, 1
      %p283 = scmp.lt.s32.totalorder %s24, 0
      %s284 = scalar_select %p283, %s24, 0
      %s285 = sadd.s32 %s284, %s282
      %s286 = smul.addr %s285, 4
      %s287 = scalar_lea.vmem %s0, %s286
      %p288 = pneg %p54
      %p289 = pneg %p51
      %p290 = scmp.lt.s32.totalorder %s23, 1
      %s291 = scalar_select %p290, %s23, 1
      %p292 = scmp.lt.s32.totalorder %s24, 0
      %s293 = scalar_select %p292, %s24, 0
      %s294 = smul.addr %s291, 4
      %s295 = sadd.s32 %s293, %s294
      %s296 = smul.addr %s295, 8
      %s297 = scalar_lea.vmem %s1, %s296
      %p298 = pneg %p82
      %p299 = pneg %p79
      %p300 = pneg %p103
      %p301 = pneg %p100
      %p302 = pneg %p124
      %p303 = pneg %p121
      %p304 = pneg %p145
      %p305 = pneg %p142
      %p306 = pneg %p166
      %p307 = pneg %p163
      %p308 = pneg %p194
      %p309 = pneg %p191
      %p310 = scmp.lt.s32.totalorder %s23, 1
      %s311 = scalar_select %p310, %s23, 1
      %p312 = scmp.lt.s32.totalorder %s24, 0
      %s313 = scalar_select %p312, %s24, 0
      %s314 = smul.addr %s311, 4
      %s315 = sadd.s32 %s313, %s314
      %s316 = smul.addr %s315, 8
      %s317 = scalar_lea.vmem %s6, %s316
      %p318 = pneg %p222
      %p319 = pneg %p219
      %p320 = scmp.lt.s32.totalorder %s23, 1
      %s321 = scalar_select %p320, %s23, 1
      %p322 = scmp.lt.s32.totalorder %s24, 0
      %s323 = scalar_select %p322, %s24, 0
      %s324 = smul.addr %s321, 4
      %s325 = sadd.s32 %s323, %s324
      %s326 = smul.addr %s325, 8
      %s327 = scalar_lea.vmem %s7, %s326
      %p328 = scmp.lt.s32.totalorder %s23, 1
      %s329 = scalar_select %p328, %s23, 1
      %p330 = scmp.lt.s32.totalorder %s24, 0
      %s331 = scalar_select %p330, %s24, 0
      %s332 = sadd.s32 %s331, %s329
      %s333 = smul.addr %s332, 4
      %s334 = scalar_lea.vmem %s0, %s333
      %p335 = scmp.lt.s32.totalorder %s23, 1
      %s336 = scalar_select %p335, %s23, 1
      %p337 = scmp.lt.s32.totalorder %s24, 0
      %s338 = scalar_select %p337, %s24, 0
      %s339 = smul.addr %s336, 4
      %s340 = sadd.s32 %s338, %s339
      %s341 = smul.addr %s340, 8
      %s342 = scalar_lea.vmem %s1, %s341
      %p343 = scmp.lt.s32.totalorder %s23, 1
      %s344 = scalar_select %p343, %s23, 1
      %p345 = scmp.lt.s32.totalorder %s24, 0
      %s346 = scalar_select %p345, %s24, 0
      %s347 = smul.addr %s344, 4
      %s348 = sadd.s32 %s346, %s347
      %s349 = smul.addr %s348, 8
      %s350 = scalar_lea.vmem %s6, %s349
      %p351 = scmp.lt.s32.totalorder %s23, 1
      %s352 = scalar_select %p351, %s23, 1
      %p353 = scmp.lt.s32.totalorder %s24, 0
      %s354 = scalar_select %p353, %s24, 0
      %s355 = smul.addr %s352, 4
      %s356 = sadd.s32 %s354, %s355
      %s357 = smul.addr %s356, 8
      %s358 = scalar_lea.vmem %s7, %s357
      %v359 = vld [vmem:[%s342] sm:$0xff]
      %v360 = vld [vmem:[%s342 + $0x8] sm:$0xff]
      %v361 = vld [vmem:[%s342 + $0x10] sm:$0xff]
      %v362 = vld [vmem:[%s342 + $0x18] sm:$0xff]
      %v363 = vld [vmem:[%s334] sm:$0xf]
      %v364 = vld [vmem:[%s2] sm:$0xff]
      %v365 = vld [vmem:[%s2 + $0x8] sm:$0xff]
      %v366 = vld [vmem:[%s2 + $0x10] sm:$0xff]
      %v367 = vld [vmem:[%s2 + $0x18] sm:$0xff]
      %v368 = vld [vmem:[%s2 + $0x20] sm:$0xff]
      %v369 = vld [vmem:[%s2 + $0x28] sm:$0xff]
      %v370 = vld [vmem:[%s2 + $0x30] sm:$0xff]
      %v371 = vld [vmem:[%s2 + $0x38] sm:$0xff]
      %v372 = vld [vmem:[%s2 + $0x40] sm:$0xff]
      %v373 = vld [vmem:[%s2 + $0x48] sm:$0xff]
      %v374 = vld [vmem:[%s2 + $0x50] sm:$0xff]
      %v375 = vld [vmem:[%s2 + $0x58] sm:$0xff]
      %v376 = vld [vmem:[%s5] sm:$0xff]
      %v377 = vld [vmem:[%s5 + $0x8] sm:$0xff]
      %v378 = vld [vmem:[%s5 + $0x10] sm:$0xff]
      %v379 = vld [vmem:[%s5 + $0x18] sm:$0xff]
      %v380 = vld [vmem:[%s5 + $0x20] sm:$0xff]
      %v381 = vld [vmem:[%s5 + $0x28] sm:$0xff]
      %v382 = vld [vmem:[%s5 + $0x30] sm:$0xff]
      %v383 = vld [vmem:[%s5 + $0x38] sm:$0xff]
      %v384 = vld [vmem:[%s5 + $0x40] sm:$0xff]
      %v385 = vld [vmem:[%s5 + $0x48] sm:$0xff]
      %v386 = vld [vmem:[%s5 + $0x50] sm:$0xff]
      %v387 = vld [vmem:[%s5 + $0x58] sm:$0xff]
      %389 = vset.pattern.permute.xlu0 0
      %390 = vperm.xlu0 %389, %v376
      %v391 = vpop.permute.xlu0 %390
      %394 = vset.pattern.permute.xlu0 0
      %395 = vperm.xlu0 %394, %v377
      %v396 = vpop.permute.xlu0 %395
      %399 = vset.pattern.permute.xlu0 0
      %400 = vperm.xlu0 %399, %v378
      %v401 = vpop.permute.xlu0 %400
      %404 = vset.pattern.permute.xlu0 0
      %405 = vperm.xlu0 %404, %v379
      %v406 = vpop.permute.xlu0 %405
      %409 = vset.pattern.permute.xlu0 0
      %410 = vperm.xlu0 %409, %v380
      %v411 = vpop.permute.xlu0 %410
      %414 = vset.pattern.permute.xlu0 0
      %415 = vperm.xlu0 %414, %v381
      %v416 = vpop.permute.xlu0 %415
      %419 = vset.pattern.permute.xlu0 0
      %420 = vperm.xlu0 %419, %v382
      %v421 = vpop.permute.xlu0 %420
      %424 = vset.pattern.permute.xlu0 0
      %425 = vperm.xlu0 %424, %v383
      %v426 = vpop.permute.xlu0 %425
      %429 = vset.pattern.permute.xlu0 0
      %430 = vperm.xlu0 %429, %v384
      %v431 = vpop.permute.xlu0 %430
      %434 = vset.pattern.permute.xlu0 0
      %435 = vperm.xlu0 %434, %v385
      %v436 = vpop.permute.xlu0 %435
      %439 = vset.pattern.permute.xlu0 0
      %440 = vperm.xlu0 %439, %v386
      %v441 = vpop.permute.xlu0 %440
      %444 = vset.pattern.permute.xlu0 0
      %445 = vperm.xlu0 %444, %v387
      %v446 = vpop.permute.xlu0 %445
      %vm448 = vcmask 31744
      %v450 = vsel %vm448, %v364, 0
      %v453 = vsel %vm448, %v365, 0
      %v456 = vsel %vm448, %v366, 0
      %v459 = vsel %vm448, %v367, 0
      %v462 = vsel %vm448, %v368, 0
      %v465 = vsel %vm448, %v369, 0
      %v468 = vsel %vm448, %v370, 0
      %v471 = vsel %vm448, %v371, 0
      %v474 = vsel %vm448, %v372, 0
      %v477 = vsel %vm448, %v373, 0
      %v480 = vsel %vm448, %v374, 0
      %v483 = vsel %vm448, %v375, 0
      %vm485 = vcmask 1043456
      %v487 = vsel %vm485, %v363, 0
      %489 = vmatpush.msra.mxu0 0.0
      %490 = vmatpush.msra.mxu0 0.0
      %491 = vmatpush.msra.mxu0 0.0
      %492 = vmatpush.msra.mxu0 0.0
      %493 = vmatpush.msra.mxu0 0.0
      %494 = vmatpush.msra.mxu0 0.0
      %495 = vmatpush.msra.mxu0 0.0
      %496 = vmatpush.msra.mxu0 0.0
      %497 = vmatpush.msra.mxu0 0.0
      %498 = vmatpush.msra.mxu0 0.0
      %499 = vmatpush.msra.mxu0 0.0
      %500 = vmatpush.msra.mxu0 0.0
      %501 = vmatpush.msra.mxu0 0.0
      %502 = vmatpush.msra.mxu0 0.0
      %503 = vmatpush.msra.mxu0 0.0
      %504 = vmatpush.msra.mxu0 %v487
      %505 = vmatmul.f32.gmra.mxu0 %v450
      %v506 = vpop.f32.mrf.mxu0
      %v507 = vadd.f32 %v391, %v506
      %508 = vmatmul.f32.gmra.mxu0 %v453
      %v509 = vpop.f32.mrf.mxu0
      %v510 = vadd.f32 %v396, %v509
      %511 = vmatmul.f32.gmra.mxu0 %v456
      %v512 = vpop.f32.mrf.mxu0
      %v513 = vadd.f32 %v401, %v512
      %514 = vmatmul.f32.gmra.mxu0 %v459
      %v515 = vpop.f32.mrf.mxu0
      %v516 = vadd.f32 %v406, %v515
      %517 = vmatmul.f32.gmra.mxu0 %v462
      %v518 = vpop.f32.mrf.mxu0
      %v519 = vadd.f32 %v411, %v518
      %520 = vmatmul.f32.gmra.mxu0 %v465
      %v521 = vpop.f32.mrf.mxu0
      %v522 = vadd.f32 %v416, %v521
      %523 = vmatmul.f32.gmra.mxu0 %v468
      %v524 = vpop.f32.mrf.mxu0
      %v525 = vadd.f32 %v421, %v524
      %526 = vmatmul.f32.gmra.mxu0 %v471
      %v527 = vpop.f32.mrf.mxu0
      %v528 = vadd.f32 %v426, %v527
      %529 = vmatmul.f32.gmra.mxu0 %v474
      %v530 = vpop.f32.mrf.mxu0
      %v531 = vadd.f32 %v431, %v530
      %532 = vmatmul.f32.gmra.mxu0 %v477
      %v533 = vpop.f32.mrf.mxu0
      %v534 = vadd.f32 %v436, %v533
      %535 = vmatmul.f32.gmra.mxu0 %v480
      %v536 = vpop.f32.mrf.mxu0
      %v537 = vadd.f32 %v441, %v536
      %538 = vmatmul.f32.gmra.mxu0 %v483
      %v539 = vpop.f32.mrf.mxu0
      %v540 = vadd.f32 %v446, %v539
      %541 = vdwg.mxu0
      %v542 = vld [vmem:[%s3] sm:$0xff]
      %v543 = vld [vmem:[%s3 + $0x8] sm:$0xff]
      %v544 = vld [vmem:[%s3 + $0x10] sm:$0xff]
      %v545 = vld [vmem:[%s3 + $0x18] sm:$0xff]
      %v546 = vld [vmem:[%s3 + $0x20] sm:$0xff]
      %v547 = vld [vmem:[%s3 + $0x28] sm:$0xff]
      %v548 = vld [vmem:[%s3 + $0x30] sm:$0xff]
      %v549 = vld [vmem:[%s3 + $0x38] sm:$0xff]
      %vm550 = vcmask 261120
      %v552 = vsel %vm550, %v542, 0
      %v555 = vsel %vm550, %v543, 0
      %v558 = vsel %vm550, %v544, 0
      %v561 = vsel %vm550, %v545, 0
      %v564 = vsel %vm550, %v546, 0
      %v567 = vsel %vm550, %v547, 0
      %v570 = vsel %vm550, %v548, 0
      %v573 = vsel %vm550, %v549, 0
      %575 = vmatpush.msra.mxu0 0.0
      %576 = vmatpush.msra.mxu0 0.0
      %577 = vmatpush.msra.mxu0 0.0
      %578 = vmatpush.msra.mxu0 0.0
      %579 = vmatpush.msra.mxu0 0.0
      %580 = vmatpush.msra.mxu0 0.0
      %581 = vmatpush.msra.mxu0 0.0
      %582 = vmatpush.msra.mxu0 0.0
      %583 = vmatpush.msra.mxu0 0.0
      %584 = vmatpush.msra.mxu0 0.0
      %585 = vmatpush.msra.mxu0 0.0
      %586 = vmatpush.msra.mxu0 0.0
      %587 = vmatpush.msra.mxu0 %v362
      %588 = vmatpush.msra.mxu0 %v361
      %589 = vmatpush.msra.mxu0 %v360
      %590 = vmatpush.msra.mxu0 %v359
      %591 = vmatmul.f32.gmra.mxu0 %v552
      %v592 = vpop.f32.mrf.mxu0
      %v593 = vadd.f32 0.0, %v592
      %594 = vmatmul.f32.gmra.mxu0 %v555
      %v595 = vpop.f32.mrf.mxu0
      %v596 = vadd.f32 0.0, %v595
      %597 = vmatmul.f32.gmra.mxu0 %v558
      %v598 = vpop.f32.mrf.mxu0
      %v599 = vadd.f32 0.0, %v598
      %600 = vmatmul.f32.gmra.mxu0 %v561
      %v601 = vpop.f32.mrf.mxu0
      %v602 = vadd.f32 0.0, %v601
      %603 = vmatmul.f32.gmra.mxu0 %v564
      %v604 = vpop.f32.mrf.mxu0
      %v605 = vadd.f32 0.0, %v604
      %606 = vmatmul.f32.gmra.mxu0 %v567
      %v607 = vpop.f32.mrf.mxu0
      %v608 = vadd.f32 0.0, %v607
      %609 = vmatmul.f32.gmra.mxu0 %v570
      %v610 = vpop.f32.mrf.mxu0
      %v611 = vadd.f32 0.0, %v610
      %612 = vmatmul.f32.gmra.mxu0 %v573
      %v613 = vpop.f32.mrf.mxu0
      %v614 = vadd.f32 0.0, %v613
      %615 = vdwg.mxu0
      %v616 = vadd.f32 %v507, %v593
      %v617 = vadd.f32 %v510, %v596
      %v618 = vadd.f32 %v513, %v599
      %v619 = vadd.f32 %v516, %v602
      %v620 = vmul.f32 %v616, 0.5
      %v621 = vmul.f32 %v617, 0.5
      %v622 = vmul.f32 %v618, 0.5
      %v623 = vmul.f32 %v619, 0.5
      %v624 = vtanh.pop %v620
      %v625 = vtanh.pop %v621
      %v626 = vtanh.pop %v622
      %v627 = vtanh.pop %v623
      %v628 = vmul.f32 %v624, 0.5
      %v629 = vmul.f32 %v625, 0.5
      %v630 = vmul.f32 %v626, 0.5
      %v631 = vmul.f32 %v627, 0.5
      %v632 = vadd.f32 %v628, 0.5
      %v633 = vadd.f32 %v629, 0.5
      %v634 = vadd.f32 %v630, 0.5
      %v635 = vadd.f32 %v631, 0.5
      %v636 = vadd.f32 %v519, %v605
      %v637 = vadd.f32 %v522, %v608
      %v638 = vadd.f32 %v525, %v611
      %v639 = vadd.f32 %v528, %v614
      %v640 = vmul.f32 %v636, 0.5
      %v641 = vmul.f32 %v637, 0.5
      %v642 = vmul.f32 %v638, 0.5
      %v643 = vmul.f32 %v639, 0.5
      %v644 = vtanh.pop %v640
      %v645 = vtanh.pop %v641
      %v646 = vtanh.pop %v642
      %v647 = vtanh.pop %v643
      %v648 = vmul.f32 %v644, 0.5
      %v649 = vmul.f32 %v645, 0.5
      %v650 = vmul.f32 %v646, 0.5
      %v651 = vmul.f32 %v647, 0.5
      %v652 = vadd.f32 %v648, 0.5
      %v653 = vadd.f32 %v649, 0.5
      %v654 = vadd.f32 %v650, 0.5
      %v655 = vadd.f32 %v651, 0.5
      %v656 = vmul.f32 %v632, %v359
      %v657 = vmul.f32 %v633, %v360
      %v658 = vmul.f32 %v634, %v361
      %v659 = vmul.f32 %v635, %v362
      %v660 = vld [vmem:[%s4] sm:$0xff]
      %v661 = vld [vmem:[%s4 + $0x8] sm:$0xff]
      %v662 = vld [vmem:[%s4 + $0x10] sm:$0xff]
      %v663 = vld [vmem:[%s4 + $0x18] sm:$0xff]
      %v665 = vsel %vm550, %v660, 0
      %v668 = vsel %vm550, %v661, 0
      %v671 = vsel %vm550, %v662, 0
      %v674 = vsel %vm550, %v663, 0
      %676 = vmatpush.msra.mxu0 0.0
      %677 = vmatpush.msra.mxu0 0.0
      %678 = vmatpush.msra.mxu0 0.0
      %679 = vmatpush.msra.mxu0 0.0
      %680 = vmatpush.msra.mxu0 0.0
      %681 = vmatpush.msra.mxu0 0.0
      %682 = vmatpush.msra.mxu0 0.0
      %683 = vmatpush.msra.mxu0 0.0
      %684 = vmatpush.msra.mxu0 0.0
      %685 = vmatpush.msra.mxu0 0.0
      %686 = vmatpush.msra.mxu0 0.0
      %687 = vmatpush.msra.mxu0 0.0
      %688 = vmatpush.msra.mxu0 %v659
      %689 = vmatpush.msra.mxu0 %v658
      %690 = vmatpush.msra.mxu0 %v657
      %691 = vmatpush.msra.mxu0 %v656
      %692 = vmatmul.f32.gmra.mxu0 %v665
      %v693 = vpop.f32.mrf.mxu0
      %v694 = vadd.f32 0.0, %v693
      %695 = vmatmul.f32.gmra.mxu0 %v668
      %v696 = vpop.f32.mrf.mxu0
      %v697 = vadd.f32 0.0, %v696
      %698 = vmatmul.f32.gmra.mxu0 %v671
      %v699 = vpop.f32.mrf.mxu0
      %v700 = vadd.f32 0.0, %v699
      %701 = vmatmul.f32.gmra.mxu0 %v674
      %v702 = vpop.f32.mrf.mxu0
      %v703 = vadd.f32 0.0, %v702
      %704 = vdwg.mxu0
      %v705 = vadd.f32 %v531, %v694
      %v706 = vadd.f32 %v534, %v697
      %v707 = vadd.f32 %v537, %v700
      %v708 = vadd.f32 %v540, %v703
      %v709 = vmul.f32 %v705, 0.5
      %v710 = vmul.f32 %v706, 0.5
      %v711 = vmul.f32 %v707, 0.5
      %v712 = vmul.f32 %v708, 0.5
      %v713 = vtanh.pop %v709
      %v714 = vtanh.pop %v710
      %v715 = vtanh.pop %v711
      %v716 = vtanh.pop %v712
      %v717 = vmul.f32 %v713, 0.5
      %v718 = vmul.f32 %v714, 0.5
      %v719 = vmul.f32 %v715, 0.5
      %v720 = vmul.f32 %v716, 0.5
      %v721 = vadd.f32 %v717, 0.5
      %v722 = vadd.f32 %v718, 0.5
      %v723 = vadd.f32 %v719, 0.5
      %v724 = vadd.f32 %v720, 0.5
      %vm725 = vcmask 130048
      %726 = vst.msk [vmem:[%s350] sm:$0xff] %vm725, %v721
      %727 = vst.msk [vmem:[%s350 + $0x8] sm:$0xff] %vm725, %v722
      %728 = vst.msk [vmem:[%s350 + $0x10] sm:$0xff] %vm725, %v723
      %729 = vst.msk [vmem:[%s350 + $0x18] sm:$0xff] %vm725, %v724
      %v730 = vsub.f32 %v359, %v721
      %v731 = vsub.f32 %v360, %v722
      %v732 = vsub.f32 %v361, %v723
      %v733 = vsub.f32 %v362, %v724
      %v734 = vmul.f32 %v652, %v730
      %v735 = vmul.f32 %v653, %v731
      %v736 = vmul.f32 %v654, %v732
      %v737 = vmul.f32 %v655, %v733
      %v738 = vadd.f32 %v721, %v734
      %v739 = vadd.f32 %v722, %v735
      %v740 = vadd.f32 %v723, %v736
      %v741 = vadd.f32 %v724, %v737
      %742 = vst.msk [vmem:[%s358] sm:$0xff] %vm725, %v738
      %743 = vst.msk [vmem:[%s358 + $0x8] sm:$0xff] %vm725, %v739
      %744 = vst.msk [vmem:[%s358 + $0x10] sm:$0xff] %vm725, %v740
      %745 = vst.msk [vmem:[%s358 + $0x18] sm:$0xff] %vm725, %v741
      %p746 = scmp.lt.s32.totalorder %s23, 1
      %s747 = scalar_select %p746, %s23, 1
      %p748 = scmp.lt.s32.totalorder %s24, 0
      %s749 = scalar_select %p748, %s24, 0
      %s750 = smul.addr %s747, 4
      %s751 = sadd.s32 %s749, %s750
      %s752 = smul.addr %s751, 8
      %s753 = scalar_lea.vmem %s6, %s752
      %p754 = scmp.lt.s32.totalorder %s23, 1
      %s755 = scalar_select %p754, %s23, 1
      %p756 = scmp.lt.s32.totalorder %s24, 0
      %s757 = scalar_select %p756, %s24, 0
      %s758 = smul.addr %s755, 4
      %s759 = sadd.s32 %s757, %s758
      %s760 = smul.addr %s759, 8
      %s761 = scalar_lea.vmem %s7, %s760
      // Predicated region
      $region45: #{tpu_custom_call.1} parent=43 // pred_check
        %p762 = pneg %p191
      $region46: #{tpu_custom_call.1} parent=43 // pred_check_branch
        %764 = sbr.rel (%p762) target = $region48
      $region47: #{tpu_custom_call.1} parent=43 // pred_region
        _
      $region48: #{tpu_custom_call.1} parent=43 // pred_fallthru
        _
      // Predicated region
      $region49: #{tpu_custom_call.1} parent=43 // pred_check
        %p765 = pneg %p219
      $region50: #{tpu_custom_call.1} parent=43 // pred_check_branch
        %767 = sbr.rel (%p765) target = $region52
      $region51: #{tpu_custom_call.1} parent=43 // pred_region
        _
      $region52: #{tpu_custom_call.1} parent=43 // pred_fallthru
        _
    $region44: #{tpu_custom_call.1} parent=5 // pred_fallthru
      _
    %p768 = scmp.le.s32.totalorder 2, %s14
    // Predicated region
    $region53: #{tpu_custom_call.1} parent=5 // pred_check
      %p769 = pneg %p768
    $region54: #{tpu_custom_call.1} parent=5 // pred_check_branch
      %771 = sbr.rel (%p769) target = $region56
    $region55: #{tpu_custom_call.1} parent=5 // pred_region
      %s772 = ssub.s32 %s14, 2
      // Predicated region
      $region57: #{tpu_custom_call.1} parent=55 // pred_check
        %p773 = pneg %p197
      $region58: #{tpu_custom_call.1} parent=55 // pred_check_branch
        %775 = sbr.rel (%p773) target = $region60
      $region59: #{tpu_custom_call.1} parent=55 // pred_region
        %p776 = scmp.lt.s32.totalorder %s25, 1
        %s777 = scalar_select %p776, %s25, 1
        %p778 = scmp.lt.s32.totalorder %s26, 0
        %s779 = scalar_select %p778, %s26, 0
        %s780 = smul.addr %s777, 4
        %s781 = sadd.s32 %s779, %s780
        %s782 = smul.addr %s781, 8
        %s783 = scalar_lea.vmem %s6, %s782
      $region60: #{tpu_custom_call.1} parent=55 // pred_fallthru
        _
      // Predicated region
      $region61: #{tpu_custom_call.1} parent=55 // pred_check
        %p784 = pneg %p225
      $region62: #{tpu_custom_call.1} parent=55 // pred_check_branch
        %786 = sbr.rel (%p784) target = $region64
      $region63: #{tpu_custom_call.1} parent=55 // pred_region
        %p787 = scmp.lt.s32.totalorder %s25, 1
        %s788 = scalar_select %p787, %s25, 1
        %p789 = scmp.lt.s32.totalorder %s26, 0
        %s790 = scalar_select %p789, %s26, 0
        %s791 = smul.addr %s788, 4
        %s792 = sadd.s32 %s790, %s791
        %s793 = smul.addr %s792, 8
        %s794 = scalar_lea.vmem %s7, %s793
      $region64: #{tpu_custom_call.1} parent=55 // pred_fallthru
        _
    $region56: #{tpu_custom_call.1} parent=5 // pred_fallthru
      _
  $region6: #{tpu_custom_call.1} parent=0 // loop_footer
    %s18 = sadd.s32 1, %s14
  $region7: #{tpu_custom_call.1} parent=0 // loop_footer_branch
    %13 = sbr.rel target = $region3
  $region8: #{tpu_custom_call.1} parent=0 // loop_exit
    _

</llo_original>
